<compile_context>
chip_gen: v7x
topology: tpu7x:2x2x1
jax: 0.10.0
libtpu: 0.0.40
codegen_flags: <defaults>
</compile_context>

<pallas_src>
import math
from functools import lru_cache, partial

import jax
import jax.numpy as jnp
from jax.experimental import pallas as pl
from jax.experimental.pallas import tpu as pltpu


# ------------------------------ small helpers --------------------------------

def _pick_row_tile(n, target=512):
    """Largest row tile <= target that divides n and is a multiple of 8."""
    if n <= target:
        return n
    for t in range(target, 7, -1):
        if n % t == 0 and t % 8 == 0:
            return t
    return n  # TODO(synk): pad BS to a multiple of 8 instead of one giant block.


def _pick_col_tile(n, target=1024):
    """Largest lane tile <= target that divides n and is a multiple of 128."""
    if n <= target:
        return n
    t = target - (target % 128)
    while t >= 128:
        if n % t == 0:
            return t
        t -= 128
    return n


def _vmem_limit(bytes_estimate):
    # 2x headroom, clamped to v7x's 64 MiB physical VMEM per TensorCore.
    return int(min(max(2 * bytes_estimate, 32 << 20), 64 << 20))


@lru_cache(maxsize=None)
def _strided_skew_ok(S: int) -> bool:
    """Probe (once per S) whether pltpu.roll with a per-sublane stride gives
    row i a cyclic lane shift of (i+1) at this exact (S, S) shape.  Covers
    both compiled Mosaic and interpret mode and validates wrap/direction."""
    def probe(x_ref, o_ref):
        o_ref[...] = pltpu.roll(x_ref[...], shift=1, axis=1,
                                stride=1, stride_axis=0)
    x = jnp.arange(S * S, dtype=jnp.float32).reshape(S, S)
    try:
        got = jax.block_until_ready(
            pl.pallas_call(
                probe, out_shape=jax.ShapeDtypeStruct((S, S), jnp.float32))(x))
    except Exception:
        return False
    idx = (jnp.arange(S)[None, :] - (jnp.arange(S)[:, None] + 1)) % S
    want = jnp.take_along_axis(x, idx, axis=1)
    return bool(jnp.allclose(got, want))


# ------------------------- fused QKV projection kernel -----------------------

def _qkv_proj_kernel(x_ref, w_ref, y_ref):
    # x: (tm, E); w: (E, tn) slice of [Wq^T | Wk^T | Wv^T]; y: (tm, tn)
    y_ref[...] = jnp.dot(x_ref[...], w_ref[...],
                         preferred_element_type=jnp.float32).astype(y_ref.dtype)


# ------------------- attention + skew + softmax + LayerNorm ------------------

def _attn_ln_kernel(qkv_ref, er_ref, g_ref, beta_ref, o_ref, o_acc, *,
                    num_heads, head_dim, emb, scale, eps, strided_skew):
    S = qkv_ref.shape[1]
    f32 = jnp.float32
    qkv = qkv_ref[0]                        # (S, 3E)  compute dtype
    er = er_ref[...]                        # (S, hd)

    # skew bookkeeping, shared by every head
    row = jax.lax.broadcasted_iota(jnp.int32, (S, S), 0)
    col = jax.lax.broadcasted_iota(jnp.int32, (S, S), 1)
    mask_a = col <= row            # lower triangle incl. diagonal   -> a
    mask_b = col >= row + 2        # strictly above first super-diag -> bmat
    if not strided_skew:
        amount = jnp.where(row == S - 1, 0, row + 1)   # (i+1) mod S

    for h in range(num_heads):
        # TODO(synk): for head_dim < 128 these are lane-offset slices; a
        # (B, 3, H, S, hd) projection layout would make them tile-aligned.
        q = qkv[:, h * head_dim:(h + 1) * head_dim] * scale   # fold emb**-0.5 once
        k = qkv[:, emb + h * head_dim: emb + (h + 1) * head_dim]
        v = qkv[:, 2 * emb + h * head_dim: 2 * emb + (h + 1) * head_dim]

        # QEr[i, t] = (scale*q[i]) . Er[t]   (MXU matmul, contraction on hd)
        qer = jax.lax.dot_general(q, er, (((1,), (1,)), ((), ())),
                                  preferred_element_type=f32)   # (S, S)

        # torch "skew" (pad/reshape/slice) is equivalent to:
        #   Srel[i, j] = QEr[i,   S-1-i+j]  for j <= i
        #              = 0                  for j == i+1
        #              = QEr[i+1, j-i-2]    for j >= i+2
        # i.e. a per-row cyclic shift of QEr by (i+1) plus a row select.
        if strided_skew:
            # single strided XLU rotate: row i shifted right by 1 + i
            a = pltpu.roll(qer, shift=1, axis=1, stride=1, stride_axis=0)
        else:
            # log2(S) barrel-shifter fallback (constant rolls + selects)
            a = qer
            shift = 1
            while shift < S:
                a = jnp.where((amount & shift) != 0,
                              jnp.roll(a, shift, axis=1), a)
                shift *= 2
        bmat = jnp.roll(a, -1, axis=0)                 # a[i+1, :] seen at row i
        srel = jnp.where(mask_a, a, jnp.where(mask_b, bmat, 0.0))

        # scores already carry the 1/sqrt(E) scaling via the pre-scaled q
        scores = jax.lax.dot_general(q, k, (((1,), (1,)), ((), ())),
                                     preferred_element_type=f32) + srel

        # exact, numerically stable softmax (inverse only on the (S,1) column)
        m = jnp.max(scores, axis=-1, keepdims=True)
        e = jnp.exp(scores - m)
        p = e * (1.0 / jnp.sum(e, axis=-1, keepdims=True))

        # per-head output goes straight into the f32 VMEM scratch: bounds the
        # live ranges and removes the old head_outs + concatenate copy.
        o_acc[:, h * head_dim:(h + 1) * head_dim] = jnp.dot(
            p.astype(v.dtype), v, preferred_element_type=f32)

    # fused output LayerNorm over E (stats in f32), single dense (S,E) store
    o = o_acc[...]
    mu = jnp.mean(o, axis=-1, keepdims=True)
    var = jnp.mean((o - mu) ** 2, axis=-1, keepdims=True)
    o_ref[0] = ((o - mu) * jax.lax.rsqrt(var + eps) * g_ref[...]
                + beta_ref[...]).astype(o_ref.dtype)


# ---------------------------------- wrapper -----------------------------------

def attention_rel_vec_forward(x, params, num_heads, *,
                              compute_dtype=jnp.bfloat16, out_dtype=None):
    """Forward pass of Attention_Rel_Vec.

    compute_dtype is the MXU input dtype (bf16 recommended on v5e/v6e/v7x;
    f32 accumulation is always used).  out_dtype defaults to x.dtype.
    """
    B, S, E = x.shape
    H = num_heads
    hd = E // H
    scale = E ** (-0.5)
    f32 = jnp.float32
    out_dtype = x.dtype if out_dtype is None else out_dtype

    Wq, Wk, Wv = params["Wq"], params["Wk"], params["Wv"]
    Er, gamma, beta = params["Er"], params["gamma"], params["beta"]

    # ---- fused Q/K/V projection: (BS, E) @ (E, 3E), row/col tiled ----
    BS = B * S
    tm = _pick_row_tile(BS)
    tn = _pick_col_tile(3 * E)
    x2d = x.reshape(BS, E).astype(compute_dtype)
    w_qkv = jnp.concatenate([Wq.T, Wk.T, Wv.T], axis=1).astype(compute_dtype)

    isz = jnp.dtype(compute_dtype).itemsize
    proj_vmem = (tm * E + E * tn + tm * tn) * isz
    # TODO(synk): for very large E add a K-accumulation grid axis so the (E,tn)
    # weight block stays inside VMEM; on v5e consider fusing this projection
    # into the attention kernel to avoid the (B,S,3E) HBM round trip.
    qkv2d = pl.pallas_call(
        _qkv_proj_kernel,
        out_shape=jax.ShapeDtypeStruct((BS, 3 * E), compute_dtype),
        grid=(BS // tm, (3 * E) // tn),
        in_specs=[
            pl.BlockSpec((tm, E), lambda i, j: (i, 0)),
            pl.BlockSpec((E, tn), lambda i, j: (0, j)),
        ],
        out_specs=pl.BlockSpec((tm, tn), lambda i, j: (i, j)),
        compiler_params=pltpu.CompilerParams(
            dimension_semantics=("parallel", "parallel"),
            vmem_limit_bytes=_vmem_limit(proj_vmem)),
    )(x2d, w_qkv)

    qkv = qkv2d.reshape(B, S, 3 * E)   # pure reshape, no transpose

    # ---- attention + skew + softmax + LayerNorm, one batch per grid step ----
    # TODO(synk): for long sequences (S >= ~1024 on v7x's 64 MiB VMEM) replace
    # the resident (S,S) scores with a KV-tiled online-softmax loop and add a
    # q-row grid axis so each TensorCore gets several pipelined steps.
    strided_skew = _strided_skew_ok(S)
    attn_vmem = (2 * S * 3 * E * isz                        # qkv double buffer
                 + 2 * S * E * jnp.dtype(out_dtype).itemsize  # out double buffer
                 + S * hd * isz + 2 * E * 4                  # Er, gamma, beta
                 + S * E * 4                                  # f32 scratch
                 + 8 * S * S * 4)                             # (S,S) temporaries
    out = pl.pallas_call(
        partial(_attn_ln_kernel, num_heads=H, head_dim=hd, emb=E,
                scale=scale, eps=1e-5, strided_skew=strided_skew),
        out_shape=jax.ShapeDtypeStruct((B, S, E), out_dtype),
        grid=(B,),
        in_specs=[
            pl.BlockSpec((1, S, 3 * E), lambda b: (b, 0, 0)),
            pl.BlockSpec((S, hd), lambda b: (0, 0)),
            pl.BlockSpec((1, E), lambda b: (0, 0)),
            pl.BlockSpec((1, E), lambda b: (0, 0)),
        ],
        out_specs=pl.BlockSpec((1, S, E), lambda b: (b, 0, 0)),
        scratch_shapes=[pltpu.VMEM((S, E), f32)],
        compiler_params=pltpu.CompilerParams(
            dimension_semantics=("parallel",),
            vmem_limit_bytes=_vmem_limit(attn_vmem)),
    )(qkv, Er.astype(compute_dtype), gamma.reshape(1, E).astype(f32),
      beta.reshape(1, E).astype(f32))
    return out


# ----------------------- pure-JAX reference (for check) ----------------------

def reference_forward(x, params, num_heads, precision=jax.lax.Precision.HIGHEST):
    B, S, E = x.shape
    H = num_heads
    hd = E // H
    Wq, Wk, Wv = params["Wq"], params["Wk"], params["Wv"]
    Er, gamma, beta = params["Er"], params["gamma"], params["beta"]

    def proj(W):
        y = jnp.einsum('bse,fe->bsf', x, W, precision=precision)
        return y.reshape(B, S, H, hd).transpose(0, 2, 1, 3)

    q, k, v = proj(Wq), proj(Wk), proj(Wv)
    QEr = jnp.einsum('bhsd,td->bhst', q, Er, precision=precision)     # (B,H,S,S)
    padded = jnp.pad(QEr, ((0, 0), (0, 0), (0, 0), (1, 0)))
    Srel = padded.reshape(B, H, S + 1, S)[:, :, 1:, :]
    attn = jnp.einsum('bhsd,bhtd->bhst', q, k, precision=precision)
    attn = (attn + Srel) * (E ** -0.5)
    attn = jax.nn.softmax(attn, axis=-1)
    o = jnp.einsum('bhst,bhtd->bhsd', attn, v, precision=precision)
    o = o.transpose(0, 2, 1, 3).reshape(B, S, E)
    mu = o.mean(-1, keepdims=True)
    var = ((o - mu) ** 2).mean(-1, keepdims=True)
    return (o - mu) / jnp.sqrt(var + 1e-5) * gamma + beta


# ------------------------------------ main ------------------------------------

if __name__ == "__main__":
    B, S, E, H = 2, 8, 32, 4          # batch, seq_len, emb_size, num_heads
    f32 = jnp.float32

    key = jax.random.PRNGKey(0)
    kx, kq, kk, kv, ke = jax.random.split(key, 5)
    x = jax.random.normal(kx, (B, S, E), f32)
    wscale = 1.0 / math.sqrt(E)
    params = {
        "Wq": jax.random.normal(kq, (E, E), f32) * wscale,   # torch Linear weight (out,in)
        "Wk": jax.random.normal(kk, (E, E), f32) * wscale,
        "Wv": jax.random.normal(kv, (E, E), f32) * wscale,
        "Er": jax.random.normal(ke, (S, E // H), f32),       # torch.randn(seq_len, head_dim)
        "gamma": jnp.ones((E,), f32),                        # LayerNorm default affine
        "beta": jnp.zeros((E,), f32),
    }

    # f32 run.  The reference is evaluated at both HIGHEST and DEFAULT matmul
    # precision because, depending on execution mode (compiled Mosaic vs
    # interpret), the in-kernel f32 dots use full f32 or the backend default.
    out_f32 = jax.block_until_ready(
        attention_rel_vec_forward(x, params, H, compute_dtype=f32))
    ref_hi = reference_forward(x, params, H, precision=jax.lax.Precision.HIGHEST)
    ref_lo = reference_forward(x, params, H, precision=None)
    err_f32 = min(float(jnp.max(jnp.abs(out_f32 - ref_hi))),
                  float(jnp.max(jnp.abs(out_f32 - ref_lo))))
    assert err_f32 < 1e-2, f"f32 mismatch vs reference: max abs err = {err_f32}"

    # bf16 run (recommended production dtype): looser tolerance.
    out_bf16 = jax.block_until_ready(
        attention_rel_vec_forward(x, params, H, compute_dtype=jnp.bfloat16))
    err_bf16 = float(jnp.max(jnp.abs(out_bf16.astype(f32) - ref_hi)))
    assert err_bf16 < 1e-1, f"bf16 mismatch vs reference: max abs err = {err_bf16}"

    print("KERNEL_OK")
</pallas_src>

<mosaic_0001>
module attributes {stable_mosaic.version = 11 : i64} {
  func.func @_qkv_proj_kernel(%arg0: i32, %arg1: i32, %arg2: memref<16x32xf32, #tpu.memory_space<vmem>>, %arg3: memref<32x96xf32, #tpu.memory_space<vmem>>, %arg4: memref<16x96xf32, #tpu.memory_space<vmem>>) attributes {dimension_semantics = [#tpu.dimension_semantics<parallel>, #tpu.dimension_semantics<parallel>], iteration_bounds = array<i64: 1, 1>, scalar_prefetch = 0 : i64, scratch_operands = 0 : i64, tpu.core_type = #tpu.core_type<tc>, window_params = [{transform_indices = @transform_0, window_bounds = array<i64: 16, 32>}, {transform_indices = @transform_1, window_bounds = array<i64: 32, 96>}, {transform_indices = @transform_2, window_bounds = array<i64: 16, 96>}]} {
    %c0 = arith.constant 0 : index
    %c0_0 = arith.constant 0 : index
    %0 = vector.load %arg2[%c0, %c0_0] : memref<16x32xf32, #tpu.memory_space<vmem>>, vector<16x32xf32>
    %c0_1 = arith.constant 0 : index
    %c0_2 = arith.constant 0 : index
    %1 = vector.load %arg3[%c0_1, %c0_2] : memref<32x96xf32, #tpu.memory_space<vmem>>, vector<32x96xf32>
    %cst = arith.constant dense<0.000000e+00> : vector<16x96xf32>
    %2 = tpu.matmul %0, %1, %cst {dimension_numbers = #tpu.dot_dimension_numbers<[1], [0], [0], [1], [0, 0, 1, 1], [], []>} : vector<16x32xf32>, vector<32x96xf32>, vector<16x96xf32> -> vector<16x96xf32>
    %c0_3 = arith.constant 0 : index
    %c0_4 = arith.constant 0 : index
    %3 = vector.load %arg4[%c0_3, %c0_4] : memref<16x96xf32, #tpu.memory_space<vmem>>, vector<16x96xf32>
    tpu.vector_store %arg4[%c0_3, %c0_4], %2 {strides = array<i32>} : memref<16x96xf32, #tpu.memory_space<vmem>>, vector<16x96xf32>,
    return
  }
  func.func @transform_0(%arg0: i32, %arg1: i32) -> (i32, i32) {
    %c0_i32 = arith.constant 0 : i32
    %c0_i32_0 = arith.constant 0 : i32
    return %arg0, %c0_i32 : i32, i32
  }
  func.func @transform_1(%arg0: i32, %arg1: i32) -> (i32, i32) {
    %c0_i32 = arith.constant 0 : i32
    %c0_i32_0 = arith.constant 0 : i32
    return %c0_i32, %arg1 : i32, i32
  }
  func.func @transform_2(%arg0: i32, %arg1: i32) -> (i32, i32) {
    %c0_i32 = arith.constant 0 : i32
    return %arg0, %arg1 : i32, i32
  }
}

</mosaic_0001>

<llo_original>
// kernel: tpu_custom_call.1
$region0: #{tpu_custom_call.1}
  #allocation0 [shape = 'u32[]', space=smem, size = 0x4, offset = 0x4, fixed_abs, tag = 'smem constant byte address 0x4 - core index']
  #allocation1 [shape = 'u32[144,128]{1,0:T(1,128)}', space=vmem, size = 0x12000, scoped, tag = 'internal scratch']
  %s0 = inlined_call_operand.hbm [shape: f32[16,32], index: 0, kind: input, shape index: {}]
  %s1 = inlined_call_operand.hbm [shape: f32[32,96], index: 1, kind: input, shape index: {}]
  %s2 = inlined_call_operand.hbm [shape: f32[16,96], index: 2, kind: output, shape index: {}]
  %s3 = sld [smem:[#allocation0]]
  $region26: #{tpu_custom_call.1} parent=0
    _
  %s5 = ssub.s32 1, %s3
  %s6 = scalar_select 0, %s5, %s3
  $region1: #{tpu_custom_call.1} parent=0
    #allocation2 [shape = 'u8[8192]{0}', space=vmem, size = 0x2000, scoped, tag = 'input window, operand 0, single buffered']
    #allocation3 [shape = 's32[1]{0}', space=sflag, size = 0x4, scoped, tag = 'scoped memory for tpu_custom_call.1']
    #allocation4 [shape = 's32[1]{0}', space=sflag, size = 0x4, scoped, tag = 'scoped memory for tpu_custom_call.1']
    #allocation5 [shape = 'u8[16384]{0}', space=vmem, size = 0x4000, scoped, tag = 'input window, operand 1, single buffered']
    #allocation6 [shape = 's32[1]{0}', space=sflag, size = 0x4, scoped, tag = 'scoped memory for tpu_custom_call.1']
    #allocation7 [shape = 'u8[8192]{0}', space=vmem, size = 0x2000, scoped, tag = 'output window, operand 0, single buffered']
    %7 = vsyncpa [#allocation3], 0
    %8 = vsyncpa [#allocation6], 0
    %9 = vsyncpa [#allocation4], 0
    // Predicated region
    $region2: #{tpu_custom_call.1} parent=1 // pred_check
      _
    $region3: #{tpu_custom_call.1} parent=1 // pred_check_branch
      %11 = sbr.rel (0) target = $region5
    $region4: #{tpu_custom_call.1} parent=1 // pred_region
      %s13 = ssub.s32 256, 256
      %14 = vsyncadd [#allocation3], %s13
      %s15 = sshll.u32 [#allocation2], 4
      %s16 = int_to_ptr.vmem [resolvable:$true] %s15
      %21 = dma.hbm_to_vmem [thread:$0]  %s0, 256, %s16, [#allocation3], 128, 128, 8
    $region5: #{tpu_custom_call.1} parent=1 // pred_fallthru
      _
    // Predicated region
    $region6: #{tpu_custom_call.1} parent=1 // pred_check
      _
    $region7: #{tpu_custom_call.1} parent=1 // pred_check_branch
      %23 = sbr.rel (0) target = $region9
    $region8: #{tpu_custom_call.1} parent=1 // pred_region
      %s25 = ssub.s32 512, 512
      %26 = vsyncadd [#allocation6], %s25
      %s27 = sshll.u32 [#allocation5], 4
      %s28 = int_to_ptr.vmem [resolvable:$true] %s27
      %33 = dma.hbm_to_vmem [thread:$0]  %s1, 512, %s28, [#allocation6], 128, 128, 8
    $region9: #{tpu_custom_call.1} parent=1 // pred_fallthru
      _
    // Predicated region
    $region10: #{tpu_custom_call.1} parent=1 // pred_check
      _
    $region11: #{tpu_custom_call.1} parent=1 // pred_check_branch
      %35 = sbr.rel (0) target = $region13
    $region12: #{tpu_custom_call.1} parent=1 // pred_region
      %36 = dma.done [#allocation3], 256
    $region13: #{tpu_custom_call.1} parent=1 // pred_fallthru
      _
    // Predicated region
    $region14: #{tpu_custom_call.1} parent=1 // pred_check
      _
    $region15: #{tpu_custom_call.1} parent=1 // pred_check_branch
      %38 = sbr.rel (0) target = $region17
    $region16: #{tpu_custom_call.1} parent=1 // pred_region
      %39 = dma.done [#allocation6], 512
    $region17: #{tpu_custom_call.1} parent=1 // pred_fallthru
      _
    %v40 = vld [vmem:[#allocation2] sm:$0xff]
    %v41 = vld [vmem:[#allocation2 + $0x8] sm:$0xff]
    %v42 = vld [vmem:[#allocation5] sm:$0xff]
    %v43 = vld [vmem:[#allocation5 + $0x8] sm:$0xff]
    %v44 = vld [vmem:[#allocation5 + $0x10] sm:$0xff]
    %v45 = vld [vmem:[#allocation5 + $0x18] sm:$0xff]
    %vm46 = vcmask 261120
    %v48 = vsel %vm46, %v40, 0
    %v51 = vsel %vm46, %v41, 0
    %53 = vmatprep.subr.mxu0 0.0
    %54 = vmatpush1.msra.mxu0 %v42
    %55 = vmatprep.subr.mxu0 0.0
    %56 = vmatpush1.msra.mxu0 %v43
    %57 = vmatprep.subr.mxu0 0.0
    %58 = vmatpush1.msra.mxu0 %v44
    %59 = vmatprep.subr.mxu0 0.0
    %60 = vmatpush1.msra.mxu0 %v45
    %61 = vmatprep.subr.mxu0 0.0
    %62 = vmatpush1.msra.mxu0 0.0
    %63 = vmatprep.subr.mxu0 0.0
    %64 = vmatpush1.msra.mxu0 0.0
    %65 = vmatprep.subr.mxu0 0.0
    %66 = vmatpush1.msra.mxu0 0.0
    %67 = vmatprep.subr.mxu0 0.0
    %68 = vmatpush1.msra.mxu0 0.0
    %69 = vmatprep.subr.mxu0 0.0
    %70 = vmatpush1.msra.mxu0 0.0
    %71 = vmatprep.subr.mxu0 0.0
    %72 = vmatpush1.msra.mxu0 0.0
    %73 = vmatprep.subr.mxu0 0.0
    %74 = vmatpush1.msra.mxu0 0.0
    %75 = vmatprep.subr.mxu0 0.0
    %76 = vmatpush1.msra.mxu0 0.0
    %77 = vmatprep.subr.mxu0 0.0
    %78 = vmatpush1.msra.mxu0 0.0
    %79 = vmatprep.subr.mxu0 0.0
    %80 = vmatpush1.msra.mxu0 0.0
    %81 = vmatprep.subr.mxu0 0.0
    %82 = vmatpush1.msra.mxu0 0.0
    %83 = vmatprep.subr.mxu0 0.0
    %84 = vmatpush1.msra.mxu0 0.0
    %85 = vmatprep.subr.mxu0 0.0
    %86 = vmatpush1.msra.mxu0 0.0
    %87 = vmatprep.subr.mxu0 0.0
    %88 = vmatpush1.msra.mxu0 0.0
    %89 = vmatprep.subr.mxu0 0.0
    %90 = vmatpush1.msra.mxu0 0.0
    %91 = vmatprep.subr.mxu0 0.0
    %92 = vmatpush1.msra.mxu0 0.0
    %93 = vmatprep.subr.mxu0 0.0
    %94 = vmatpush1.msra.mxu0 0.0
    %95 = vmatprep.subr.mxu0 0.0
    %96 = vmatpush1.msra.mxu0 0.0
    %97 = vmatprep.subr.mxu0 0.0
    %98 = vmatpush1.msra.mxu0 0.0
    %99 = vmatprep.subr.mxu0 0.0
    %100 = vmatpush1.msra.mxu0 0.0
    %101 = vmatprep.subr.mxu0 0.0
    %102 = vmatpush1.msra.mxu0 0.0
    %103 = vmatprep.subr.mxu0 0.0
    %104 = vmatpush1.msra.mxu0 0.0
    %105 = vmatprep.subr.mxu0 0.0
    %106 = vmatpush1.msra.mxu0 0.0
    %107 = vmatprep.subr.mxu0 0.0
    %108 = vmatpush1.msra.mxu0 0.0
    %109 = vmatprep.subr.mxu0 0.0
    %110 = vmatpush1.msra.mxu0 0.0
    %111 = vmatprep.subr.mxu0 0.0
    %112 = vmatpush1.msra.mxu0 0.0
    %113 = vmatprep.subr.mxu0 0.0
    %114 = vmatpush1.msra.mxu0 0.0
    %115 = vmatprep.subr.mxu0 0.0
    %116 = vmatpush1.msra.mxu0 0.0
    %117 = vmatprep.mubr.f32.mxu0 0.0
    %118 = vmatmul.mubr.f32.gmra.mrb[0].mxu0 %v48
    %v119 = vpop.f32.mrb[0].mxu0
    %v120 = vadd.f32 0.0, %v119
    %v121 = vpop.f32.mrb[0].mxu0
    %122 = vmatprep.mubr.f32.mxu0 0.0
    %123 = vmatmul.mubr.f32.gmra.mrb[0].mxu0 %v51
    %v124 = vpop.f32.mrb[0].mxu0
    %v125 = vadd.f32 0.0, %v124
    %v126 = vpop.f32.mrb[0].mxu0
    %127 = vdwg.mxu0
    %vm128 = vcmask 785408
    %129 = vst.msk [vmem:[#allocation7] sm:$0xff] %vm128, %v120
    %130 = vst.msk [vmem:[#allocation7 + $0x8] sm:$0xff] %vm128, %v125
    // Predicated region
    $region18: #{tpu_custom_call.1} parent=1 // pred_check
      _
    $region19: #{tpu_custom_call.1} parent=1 // pred_check_branch
      %132 = sbr.rel (0) target = $region21
    $region20: #{tpu_custom_call.1} parent=1 // pred_region
      %s134 = ssub.s32 256, 256
      %135 = vsyncadd [#allocation4], %s134
      %s136 = sshll.u32 [#allocation7], 4
      %s137 = int_to_ptr.vmem [resolvable:$true] %s136
      %142 = dma.vmem_to_hbm [thread:$0]  %s137, 256, %s2, [#allocation4], 128, 128, 8
    $region21: #{tpu_custom_call.1} parent=1 // pred_fallthru
      _
    // Predicated region
    $region22: #{tpu_custom_call.1} parent=1 // pred_check
      _
    $region23: #{tpu_custom_call.1} parent=1 // pred_check_branch
      %144 = sbr.rel (0) target = $region25
    $region24: #{tpu_custom_call.1} parent=1 // pred_region
      %145 = dma.done [#allocation4], 256
    $region25: #{tpu_custom_call.1} parent=1 // pred_fallthru
      _
    %146 = vsyncpa [#allocation3], 1
    %147 = vsyncpa [#allocation6], 1
    %148 = vsyncpa [#allocation4], 1

</llo_original>
